<compile_context>
chip_gen: v5e
topology: v5e:2x2
jax: 0.10.0
libtpu: 0.0.40
codegen_flags: <defaults>
</compile_context>

<pallas_src>
import jax
import jax.numpy as jnp
from jax.experimental import pallas as pl
from jax.experimental.pallas import tpu as pltpu


def _round_up(x: int, m: int) -> int:
    return ((x + m - 1) // m) * m


def _feature_tile(F: int, HW: int, block_budget_bytes: int = 4 << 20) -> int:
    """Largest t_f dividing F with (t_f % 8 == 0 or t_f == F) whose f32 output
    block t_f*HW*4B fits the per-buffer budget (Pallas double-buffers it)."""
    cands = [t for t in range(1, F + 1) if F % t == 0 and (t % 8 == 0 or t == F)]
    fitting = [t for t in cands if t * HW * 4 <= block_budget_bytes]
    return max(fitting) if fitting else min(cands)


def _pos_embed_kernel(col_ref, row_ref, out_ref):
    """One (half, batch, feature-tile) output block.

    col_ref: (F, W)   full col_embed.weight[:W].T  (resident, fetched once)
    row_ref: (F, H)   full row_embed.weight[:H].T  (resident, fetched once)
    out_ref: (t_f, HW) lane-dense block; half 0 = col part, half 1 = row part

    Pure data movement (tile / lane-broadcast / store): no iota, no compares,
    no MXU gather -> results are bit-exact copies of the weights.  Partial-lane
    stores below only touch the VMEM block; the HBM writeback of the block is a
    single lane-dense (t_f, HW) DMA.
    """
    F_total, W = col_ref.shape
    _, H = row_ref.shape
    t_f, HW = out_ref.shape
    half = pl.program_id(0)

    def f_slice(ref):
        if t_f == F_total:                 # common case: whole table, no tiling
            return ref[...]
        f0 = pl.multiple_of(pl.program_id(2) * t_f, t_f)
        return ref[pl.ds(f0, t_f), :]

    # How many spatial rows fit in one 128-lane-aligned store.
    g = min(128 // W, H) if (W < 128 and 128 % W == 0) else 1

    @pl.when(half == 0)
    def _():
        # out[c, i*W + j] = col[c, j]: replicate the (t_f, W) tile along lanes.
        colv = f_slice(col_ref)                                  # (t_f, W)
        piece = colv if g == 1 else jnp.tile(colv, (1, g))       # built once per block
        pw = g * W
        for b in range(H // g):                                  # 128-lane aligned stores
            out_ref[:, b * pw:(b + 1) * pw] = piece
        for i in range((H // g) * g, H):                         # ragged tail rows
            out_ref[:, i * W:(i + 1) * W] = colv

    @pl.when(half == 1)
    def _():
        # out[c, i*W + j] = row[c, i]: lane-broadcast one table column per row.
        rowv = f_slice(row_ref)                                  # (t_f, H)
        for i in range(H):
            out_ref[:, i * W:(i + 1) * W] = jnp.broadcast_to(
                rowv[:, i:i + 1], (t_f, W))


def position_embedding_learned(x, row_weight, col_weight, *, materialize_batch=True):
    """Forward pass matching PositionEmbeddingLearned.

    x:          (B, C, H, W)  -- only the shape is used
    row_weight: (64, F) learned row embedding table
    col_weight: (64, F) learned col embedding table
    returns:    (B, 2F, H, W) float32
    """
    B = int(x.shape[0])
    H, W = int(x.shape[-2]), int(x.shape[-1])
    F = int(row_weight.shape[1])
    if H > row_weight.shape[0] or W > col_weight.shape[0]:
        # nn.Embedding would raise an index-out-of-range error here.
        raise ValueError(f"feature map ({H}, {W}) exceeds embedding tables "
                         f"({row_weight.shape[0]}, {col_weight.shape[0]})")
    HW = H * W

    # arange-indexed embedding lookup == leading slice of the table; transpose the
    # tiny (<=64, F) tables so the feature axis maps to sublanes.  Layout plumbing
    # on KBs of data, negligible next to the (2F, HW) output.
    col_t = col_weight[:W].astype(jnp.float32).T      # (F, W)
    row_t = row_weight[:H].astype(jnp.float32).T      # (F, H)

    t_f = _feature_tile(F, HW)
    n_f = F // t_f
    nb = B if materialize_batch else 1

    # Explicit VMEM budget (v7x has a smaller scoped-VMEM default): double-buffered
    # output block + both (once-fetched) input blocks, with padding and headroom.
    out_blk = _round_up(t_f, 8) * _round_up(HW, 128) * 4
    col_blk = _round_up(F, 8) * _round_up(W, 128) * 4
    row_blk = _round_up(F, 8) * _round_up(H, 128) * 4
    needed = 2 * (out_blk + col_blk + row_blk)
    vmem_limit = int(min(96 << 20, max(8 << 20, 2 * needed)))

    cost = pl.CostEstimate(
        flops=0,
        transcendentals=0,
        bytes_accessed=nb * 2 * F * HW * 4 + F * (H + W) * 4,
    )

    # Output in NCHW-compatible (nb, 2, F, HW) form:
    # element (b, half, c, i*W + j) == pos[b, half*F + c, i, j].
    pos4 = pl.pallas_call(
        _pos_embed_kernel,
        out_shape=jax.ShapeDtypeStruct((nb, 2, F, HW), jnp.float32),
        grid_spec=pltpu.PrefetchScalarGridSpec(
            num_scalar_prefetch=0,
            grid=(2, nb, n_f),
            in_specs=[
                pl.BlockSpec((F, W), lambda half, b, j: (0, 0)),   # col table, once
                pl.BlockSpec((F, H), lambda half, b, j: (0, 0)),   # row table, once
            ],
            out_specs=pl.BlockSpec((None, None, t_f, HW),
                                   lambda half, b, j: (b, half, j, 0)),
        ),
        compiler_params=pltpu.CompilerParams(
            dimension_semantics=("parallel", "parallel", "parallel"),
            vmem_limit_bytes=vmem_limit,
        ),
        cost_estimate=cost,
    )(col_t, row_t)

    pos = pos4.reshape(nb, 2 * F, H, W)                # free row-major reshape
    if materialize_batch:
        return pos                                     # torch .repeat() semantics
    return jnp.broadcast_to(pos, (B, 2 * F, H, W))     # lazy; fuse into consumer


def _reference(x, row_weight, col_weight):
    # Pure-JAX reference mirroring the PyTorch forward.
    B = x.shape[0]
    H, W = x.shape[-2], x.shape[-1]
    x_emb = col_weight[:W]                                   # (W, F)
    y_emb = row_weight[:H]                                   # (H, F)
    pos = jnp.concatenate(
        [
            jnp.broadcast_to(x_emb[None, :, :], (H, W, x_emb.shape[-1])),
            jnp.broadcast_to(y_emb[:, None, :], (H, W, y_emb.shape[-1])),
        ],
        axis=-1,
    )                                                        # (H, W, 2F)
    pos = jnp.transpose(pos, (2, 0, 1))[None]                # (1, 2F, H, W)
    return jnp.broadcast_to(pos, (B,) + pos.shape[1:])


if __name__ == "__main__":
    num_pos_feats = 32       # small, consistent with the module (default 256)
    B, C, H, W = 2, 4, 16, 16

    key = jax.random.PRNGKey(0)
    k_row, k_col, k_x = jax.random.split(key, 3)

    # nn.init.uniform_ -> U[0, 1); tables are (64, num_pos_feats)
    row_weight = jax.random.uniform(k_row, (64, num_pos_feats), dtype=jnp.float32)
    col_weight = jax.random.uniform(k_col, (64, num_pos_feats), dtype=jnp.float32)

    x = jax.random.normal(k_x, (B, C, H, W), dtype=jnp.float32)

    pos = jax.block_until_ready(position_embedding_learned(x, row_weight, col_weight))
    ref = _reference(x, row_weight, col_weight)

    assert pos.shape == (B, 2 * num_pos_feats, H, W), pos.shape
    # Bit-exact check: the kernel only copies/broadcasts embedding weights.
    assert bool(jnp.array_equal(pos, ref)), "mismatch vs reference (not bit-exact)"

    print("KERNEL_OK")
</pallas_src>

<mosaic_0001>
module attributes {stable_mosaic.version = 11 : i64} {
  func.func @_pos_embed_kernel(%arg0: i32, %arg1: i32, %arg2: i32, %arg3: memref<32x16xf32, #tpu.memory_space<vmem>>, %arg4: memref<32x16xf32, #tpu.memory_space<vmem>>, %arg5: memref<1x1x32x256xf32, #tpu.memory_space<vmem>>) attributes {dimension_semantics = [#tpu.dimension_semantics<parallel>, #tpu.dimension_semantics<parallel>, #tpu.dimension_semantics<parallel>], iteration_bounds = array<i64: 2, 2, 1>, scalar_prefetch = 0 : i64, scratch_operands = 0 : i64, tpu.core_type = #tpu.core_type<tc>, window_params = [{pipeline_mode = #tpu.pipeline_mode<synchronous>, transform_indices = @transform_0, window_bounds = array<i64: 32, 16>}, {pipeline_mode = #tpu.pipeline_mode<synchronous>, transform_indices = @transform_1, window_bounds = array<i64: 32, 16>}, {transform_indices = @transform_2, window_bounds = array<i64: 1, 1, 32, 256>}]} {
    %c0_i32 = arith.constant 0 : i32
    %0 = arith.cmpi eq, %arg0, %c0_i32 : i32
    %1 = arith.extui %0 : i1 to i32
    %c0_i32_0 = arith.constant 0 : i32
    %2 = arith.cmpi ne, %1, %c0_i32_0 : i32
    scf.if %2 {
      %c0 = arith.constant 0 : index
      %c0_2 = arith.constant 0 : index
      %6 = vector.load %arg3[%c0, %c0_2] : memref<32x16xf32, #tpu.memory_space<vmem>>, vector<32x16xf32>
      %7 = tpu.concatenate %6, %6, %6, %6, %6, %6, %6, %6 in 1 : vector<32x16xf32>, vector<32x16xf32>, vector<32x16xf32>, vector<32x16xf32>, vector<32x16xf32>, vector<32x16xf32>, vector<32x16xf32>, vector<32x16xf32> -> vector<32x128xf32>
      %c0_3 = arith.constant 0 : index
      %c0_4 = arith.constant 0 : index
      %c0_5 = arith.constant 0 : index
      %c0_6 = arith.constant 0 : index
      %8 = vector.load %arg5[%c0_3, %c0_4, %c0_5, %c0_6] : memref<1x1x32x256xf32, #tpu.memory_space<vmem>>, vector<1x1x32x128xf32>
      %9 = vector.shape_cast %8 : vector<1x1x32x128xf32> to vector<32x128xf32>
      %10 = vector.shape_cast %7 : vector<32x128xf32> to vector<1x1x32x128xf32>
      tpu.vector_store %arg5[%c0_3, %c0_4, %c0_5, %c0_6], %10 {strides = array<i32>} : memref<1x1x32x256xf32, #tpu.memory_space<vmem>>, vector<1x1x32x128xf32>,
      %c0_7 = arith.constant 0 : index
      %c0_8 = arith.constant 0 : index
      %c0_9 = arith.constant 0 : index
      %c128 = arith.constant 128 : index
      %11 = vector.load %arg5[%c0_7, %c0_8, %c0_9, %c128] : memref<1x1x32x256xf32, #tpu.memory_space<vmem>>, vector<1x1x32x128xf32>
      %12 = vector.shape_cast %11 : vector<1x1x32x128xf32> to vector<32x128xf32>
      %13 = vector.shape_cast %7 : vector<32x128xf32> to vector<1x1x32x128xf32>
      tpu.vector_store %arg5[%c0_7, %c0_8, %c0_9, %c128], %13 {strides = array<i32>} : memref<1x1x32x256xf32, #tpu.memory_space<vmem>>, vector<1x1x32x128xf32>,
    } else {
    }
    %c1_i32 = arith.constant 1 : i32
    %3 = arith.cmpi eq, %arg0, %c1_i32 : i32
    %4 = arith.extui %3 : i1 to i32
    %c0_i32_1 = arith.constant 0 : i32
    %5 = arith.cmpi ne, %4, %c0_i32_1 : i32
    scf.if %5 {
      %c0 = arith.constant 0 : index
      %c0_2 = arith.constant 0 : index
      %6 = vector.load %arg4[%c0, %c0_2] : memref<32x16xf32, #tpu.memory_space<vmem>>, vector<32x16xf32>
      %7 = vector.extract_strided_slice %6 {offsets = [0, 0], sizes = [32, 1], strides = [1, 1]} : vector<32x16xf32> to vector<32x1xf32>
      %8 = vector.shape_cast %7 : vector<32x1xf32> to vector<32x1xf32>
      %9 = vector.broadcast %8 : vector<32x1xf32> to vector<32x16xf32>
      %c0_3 = arith.constant 0 : index
      %c0_4 = arith.constant 0 : index
      %c0_5 = arith.constant 0 : index
      %c0_6 = arith.constant 0 : index
      %10 = vector.load %arg5[%c0_3, %c0_4, %c0_5, %c0_6] : memref<1x1x32x256xf32, #tpu.memory_space<vmem>>, vector<1x1x32x16xf32>
      %11 = vector.shape_cast %10 : vector<1x1x32x16xf32> to vector<32x16xf32>
      %12 = vector.shape_cast %9 : vector<32x16xf32> to vector<1x1x32x16xf32>
      tpu.vector_store %arg5[%c0_3, %c0_4, %c0_5, %c0_6], %12 {strides = array<i32>} : memref<1x1x32x256xf32, #tpu.memory_space<vmem>>, vector<1x1x32x16xf32>,
      %13 = vector.extract_strided_slice %6 {offsets = [0, 1], sizes = [32, 1], strides = [1, 1]} : vector<32x16xf32> to vector<32x1xf32>
      %14 = vector.shape_cast %13 : vector<32x1xf32> to vector<32x1xf32>
      %15 = vector.broadcast %14 : vector<32x1xf32> to vector<32x16xf32>
      %c0_7 = arith.constant 0 : index
      %c0_8 = arith.constant 0 : index
      %c0_9 = arith.constant 0 : index
      %c16 = arith.constant 16 : index
      %16 = vector.load %arg5[%c0_7, %c0_8, %c0_9, %c16] : memref<1x1x32x256xf32, #tpu.memory_space<vmem>>, vector<1x1x32x16xf32>
      %17 = vector.shape_cast %16 : vector<1x1x32x16xf32> to vector<32x16xf32>
      %18 = vector.shape_cast %15 : vector<32x16xf32> to vector<1x1x32x16xf32>
      tpu.vector_store %arg5[%c0_7, %c0_8, %c0_9, %c16], %18 {strides = array<i32>} : memref<1x1x32x256xf32, #tpu.memory_space<vmem>>, vector<1x1x32x16xf32>,
      %19 = vector.extract_strided_slice %6 {offsets = [0, 2], sizes = [32, 1], strides = [1, 1]} : vector<32x16xf32> to vector<32x1xf32>
      %20 = vector.shape_cast %19 : vector<32x1xf32> to vector<32x1xf32>
      %21 = vector.broadcast %20 : vector<32x1xf32> to vector<32x16xf32>
      %c0_10 = arith.constant 0 : index
      %c0_11 = arith.constant 0 : index
      %c0_12 = arith.constant 0 : index
      %c32 = arith.constant 32 : index
      %22 = vector.load %arg5[%c0_10, %c0_11, %c0_12, %c32] : memref<1x1x32x256xf32, #tpu.memory_space<vmem>>, vector<1x1x32x16xf32>
      %23 = vector.shape_cast %22 : vector<1x1x32x16xf32> to vector<32x16xf32>
      %24 = vector.shape_cast %21 : vector<32x16xf32> to vector<1x1x32x16xf32>
      tpu.vector_store %arg5[%c0_10, %c0_11, %c0_12, %c32], %24 {strides = array<i32>} : memref<1x1x32x256xf32, #tpu.memory_space<vmem>>, vector<1x1x32x16xf32>,
      %25 = vector.extract_strided_slice %6 {offsets = [0, 3], sizes = [32, 1], strides = [1, 1]} : vector<32x16xf32> to vector<32x1xf32>
      %26 = vector.shape_cast %25 : vector<32x1xf32> to vector<32x1xf32>
      %27 = vector.broadcast %26 : vector<32x1xf32> to vector<32x16xf32>
      %c0_13 = arith.constant 0 : index
      %c0_14 = arith.constant 0 : index
      %c0_15 = arith.constant 0 : index
      %c48 = arith.constant 48 : index
      %28 = vector.load %arg5[%c0_13, %c0_14, %c0_15, %c48] : memref<1x1x32x256xf32, #tpu.memory_space<vmem>>, vector<1x1x32x16xf32>
      %29 = vector.shape_cast %28 : vector<1x1x32x16xf32> to vector<32x16xf32>
      %30 = vector.shape_cast %27 : vector<32x16xf32> to vector<1x1x32x16xf32>
      tpu.vector_store %arg5[%c0_13, %c0_14, %c0_15, %c48], %30 {strides = array<i32>} : memref<1x1x32x256xf32, #tpu.memory_space<vmem>>, vector<1x1x32x16xf32>,
      %31 = vector.extract_strided_slice %6 {offsets = [0, 4], sizes = [32, 1], strides = [1, 1]} : vector<32x16xf32> to vector<32x1xf32>
      %32 = vector.shape_cast %31 : vector<32x1xf32> to vector<32x1xf32>
      %33 = vector.broadcast %32 : vector<32x1xf32> to vector<32x16xf32>
      %c0_16 = arith.constant 0 : index
      %c0_17 = arith.constant 0 : index
      %c0_18 = arith.constant 0 : index
      %c64 = arith.constant 64 : index
      %34 = vector.load %arg5[%c0_16, %c0_17, %c0_18, %c64] : memref<1x1x32x256xf32, #tpu.memory_space<vmem>>, vector<1x1x32x16xf32>
      %35 = vector.shape_cast %34 : vector<1x1x32x16xf32> to vector<32x16xf32>
      %36 = vector.shape_cast %33 : vector<32x16xf32> to vector<1x1x32x16xf32>
      tpu.vector_store %arg5[%c0_16, %c0_17, %c0_18, %c64], %36 {strides = array<i32>} : memref<1x1x32x256xf32, #tpu.memory_space<vmem>>, vector<1x1x32x16xf32>,
      %37 = vector.extract_strided_slice %6 {offsets = [0, 5], sizes = [32, 1], strides = [1, 1]} : vector<32x16xf32> to vector<32x1xf32>
      %38 = vector.shape_cast %37 : vector<32x1xf32> to vector<32x1xf32>
      %39 = vector.broadcast %38 : vector<32x1xf32> to vector<32x16xf32>
      %c0_19 = arith.constant 0 : index
      %c0_20 = arith.constant 0 : index
      %c0_21 = arith.constant 0 : index
      %c80 = arith.constant 80 : index
      %40 = vector.load %arg5[%c0_19, %c0_20, %c0_21, %c80] : memref<1x1x32x256xf32, #tpu.memory_space<vmem>>, vector<1x1x32x16xf32>
      %41 = vector.shape_cast %40 : vector<1x1x32x16xf32> to vector<32x16xf32>
      %42 = vector.shape_cast %39 : vector<32x16xf32> to vector<1x1x32x16xf32>
      tpu.vector_store %arg5[%c0_19, %c0_20, %c0_21, %c80], %42 {strides = array<i32>} : memref<1x1x32x256xf32, #tpu.memory_space<vmem>>, vector<1x1x32x16xf32>,
      %43 = vector.extract_strided_slice %6 {offsets = [0, 6], sizes = [32, 1], strides = [1, 1]} : vector<32x16xf32> to vector<32x1xf32>
      %44 = vector.shape_cast %43 : vector<32x1xf32> to vector<32x1xf32>
      %45 = vector.broadcast %44 : vector<32x1xf32> to vector<32x16xf32>
      %c0_22 = arith.constant 0 : index
      %c0_23 = arith.constant 0 : index
      %c0_24 = arith.constant 0 : index
      %c96 = arith.constant 96 : index
      %46 = vector.load %arg5[%c0_22, %c0_23, %c0_24, %c96] : memref<1x1x32x256xf32, #tpu.memory_space<vmem>>, vector<1x1x32x16xf32>
      %47 = vector.shape_cast %46 : vector<1x1x32x16xf32> to vector<32x16xf32>
      %48 = vector.shape_cast %45 : vector<32x16xf32> to vector<1x1x32x16xf32>
      tpu.vector_store %arg5[%c0_22, %c0_23, %c0_24, %c96], %48 {strides = array<i32>} : memref<1x1x32x256xf32, #tpu.memory_space<vmem>>, vector<1x1x32x16xf32>,
      %49 = vector.extract_strided_slice %6 {offsets = [0, 7], sizes = [32, 1], strides = [1, 1]} : vector<32x16xf32> to vector<32x1xf32>
      %50 = vector.shape_cast %49 : vector<32x1xf32> to vector<32x1xf32>
      %51 = vector.broadcast %50 : vector<32x1xf32> to vector<32x16xf32>
      %c0_25 = arith.constant 0 : index
      %c0_26 = arith.constant 0 : index
      %c0_27 = arith.constant 0 : index
      %c112 = arith.constant 112 : index
      %52 = vector.load %arg5[%c0_25, %c0_26, %c0_27, %c112] : memref<1x1x32x256xf32, #tpu.memory_space<vmem>>, vector<1x1x32x16xf32>
      %53 = vector.shape_cast %52 : vector<1x1x32x16xf32> to vector<32x16xf32>
      %54 = vector.shape_cast %51 : vector<32x16xf32> to vector<1x1x32x16xf32>
      tpu.vector_store %arg5[%c0_25, %c0_26, %c0_27, %c112], %54 {strides = array<i32>} : memref<1x1x32x256xf32, #tpu.memory_space<vmem>>, vector<1x1x32x16xf32>,
      %55 = vector.extract_strided_slice %6 {offsets = [0, 8], sizes = [32, 1], strides = [1, 1]} : vector<32x16xf32> to vector<32x1xf32>
      %56 = vector.shape_cast %55 : vector<32x1xf32> to vector<32x1xf32>
      %57 = vector.broadcast %56 : vector<32x1xf32> to vector<32x16xf32>
      %c0_28 = arith.constant 0 : index
      %c0_29 = arith.constant 0 : index
      %c0_30 = arith.constant 0 : index
      %c128 = arith.constant 128 : index
      %58 = vector.load %arg5[%c0_28, %c0_29, %c0_30, %c128] : memref<1x1x32x256xf32, #tpu.memory_space<vmem>>, vector<1x1x32x16xf32>
      %59 = vector.shape_cast %58 : vector<1x1x32x16xf32> to vector<32x16xf32>
      %60 = vector.shape_cast %57 : vector<32x16xf32> to vector<1x1x32x16xf32>
      tpu.vector_store %arg5[%c0_28, %c0_29, %c0_30, %c128], %60 {strides = array<i32>} : memref<1x1x32x256xf32, #tpu.memory_space<vmem>>, vector<1x1x32x16xf32>,
      %61 = vector.extract_strided_slice %6 {offsets = [0, 9], sizes = [32, 1], strides = [1, 1]} : vector<32x16xf32> to vector<32x1xf32>
      %62 = vector.shape_cast %61 : vector<32x1xf32> to vector<32x1xf32>
      %63 = vector.broadcast %62 : vector<32x1xf32> to vector<32x16xf32>
      %c0_31 = arith.constant 0 : index
      %c0_32 = arith.constant 0 : index
      %c0_33 = arith.constant 0 : index
      %c144 = arith.constant 144 : index
      %64 = vector.load %arg5[%c0_31, %c0_32, %c0_33, %c144] : memref<1x1x32x256xf32, #tpu.memory_space<vmem>>, vector<1x1x32x16xf32>
      %65 = vector.shape_cast %64 : vector<1x1x32x16xf32> to vector<32x16xf32>
      %66 = vector.shape_cast %63 : vector<32x16xf32> to vector<1x1x32x16xf32>
      tpu.vector_store %arg5[%c0_31, %c0_32, %c0_33, %c144], %66 {strides = array<i32>} : memref<1x1x32x256xf32, #tpu.memory_space<vmem>>, vector<1x1x32x16xf32>,
      %67 = vector.extract_strided_slice %6 {offsets = [0, 10], sizes = [32, 1], strides = [1, 1]} : vector<32x16xf32> to vector<32x1xf32>
      %68 = vector.shape_cast %67 : vector<32x1xf32> to vector<32x1xf32>
      %69 = vector.broadcast %68 : vector<32x1xf32> to vector<32x16xf32>
      %c0_34 = arith.constant 0 : index
      %c0_35 = arith.constant 0 : index
      %c0_36 = arith.constant 0 : index
      %c160 = arith.constant 160 : index
      %70 = vector.load %arg5[%c0_34, %c0_35, %c0_36, %c160] : memref<1x1x32x256xf32, #tpu.memory_space<vmem>>, vector<1x1x32x16xf32>
      %71 = vector.shape_cast %70 : vector<1x1x32x16xf32> to vector<32x16xf32>
      %72 = vector.shape_cast %69 : vector<32x16xf32> to vector<1x1x32x16xf32>
      tpu.vector_store %arg5[%c0_34, %c0_35, %c0_36, %c160], %72 {strides = array<i32>} : memref<1x1x32x256xf32, #tpu.memory_space<vmem>>, vector<1x1x32x16xf32>,
      %73 = vector.extract_strided_slice %6 {offsets = [0, 11], sizes = [32, 1], strides = [1, 1]} : vector<32x16xf32> to vector<32x1xf32>
      %74 = vector.shape_cast %73 : vector<32x1xf32> to vector<32x1xf32>
      %75 = vector.broadcast %74 : vector<32x1xf32> to vector<32x16xf32>
      %c0_37 = arith.constant 0 : index
      %c0_38 = arith.constant 0 : index
      %c0_39 = arith.constant 0 : index
      %c176 = arith.constant 176 : index
      %76 = vector.load %arg5[%c0_37, %c0_38, %c0_39, %c176] : memref<1x1x32x256xf32, #tpu.memory_space<vmem>>, vector<1x1x32x16xf32>
      %77 = vector.shape_cast %76 : vector<1x1x32x16xf32> to vector<32x16xf32>
      %78 = vector.shape_cast %75 : vector<32x16xf32> to vector<1x1x32x16xf32>
      tpu.vector_store %arg5[%c0_37, %c0_38, %c0_39, %c176], %78 {strides = array<i32>} : memref<1x1x32x256xf32, #tpu.memory_space<vmem>>, vector<1x1x32x16xf32>,
      %79 = vector.extract_strided_slice %6 {offsets = [0, 12], sizes = [32, 1], strides = [1, 1]} : vector<32x16xf32> to vector<32x1xf32>
      %80 = vector.shape_cast %79 : vector<32x1xf32> to vector<32x1xf32>
      %81 = vector.broadcast %80 : vector<32x1xf32> to vector<32x16xf32>
      %c0_40 = arith.constant 0 : index
      %c0_41 = arith.constant 0 : index
      %c0_42 = arith.constant 0 : index
      %c192 = arith.constant 192 : index
      %82 = vector.load %arg5[%c0_40, %c0_41, %c0_42, %c192] : memref<1x1x32x256xf32, #tpu.memory_space<vmem>>, vector<1x1x32x16xf32>
      %83 = vector.shape_cast %82 : vector<1x1x32x16xf32> to vector<32x16xf32>
      %84 = vector.shape_cast %81 : vector<32x16xf32> to vector<1x1x32x16xf32>
      tpu.vector_store %arg5[%c0_40, %c0_41, %c0_42, %c192], %84 {strides = array<i32>} : memref<1x1x32x256xf32, #tpu.memory_space<vmem>>, vector<1x1x32x16xf32>,
      %85 = vector.extract_strided_slice %6 {offsets = [0, 13], sizes = [32, 1], strides = [1, 1]} : vector<32x16xf32> to vector<32x1xf32>
      %86 = vector.shape_cast %85 : vector<32x1xf32> to vector<32x1xf32>
      %87 = vector.broadcast %86 : vector<32x1xf32> to vector<32x16xf32>
      %c0_43 = arith.constant 0 : index
      %c0_44 = arith.constant 0 : index
      %c0_45 = arith.constant 0 : index
      %c208 = arith.constant 208 : index
      %88 = vector.load %arg5[%c0_43, %c0_44, %c0_45, %c208] : memref<1x1x32x256xf32, #tpu.memory_space<vmem>>, vector<1x1x32x16xf32>
      %89 = vector.shape_cast %88 : vector<1x1x32x16xf32> to vector<32x16xf32>
      %90 = vector.shape_cast %87 : vector<32x16xf32> to vector<1x1x32x16xf32>
      tpu.vector_store %arg5[%c0_43, %c0_44, %c0_45, %c208], %90 {strides = array<i32>} : memref<1x1x32x256xf32, #tpu.memory_space<vmem>>, vector<1x1x32x16xf32>,
      %91 = vector.extract_strided_slice %6 {offsets = [0, 14], sizes = [32, 1], strides = [1, 1]} : vector<32x16xf32> to vector<32x1xf32>
      %92 = vector.shape_cast %91 : vector<32x1xf32> to vector<32x1xf32>
      %93 = vector.broadcast %92 : vector<32x1xf32> to vector<32x16xf32>
      %c0_46 = arith.constant 0 : index
      %c0_47 = arith.constant 0 : index
      %c0_48 = arith.constant 0 : index
      %c224 = arith.constant 224 : index
      %94 = vector.load %arg5[%c0_46, %c0_47, %c0_48, %c224] : memref<1x1x32x256xf32, #tpu.memory_space<vmem>>, vector<1x1x32x16xf32>
      %95 = vector.shape_cast %94 : vector<1x1x32x16xf32> to vector<32x16xf32>
      %96 = vector.shape_cast %93 : vector<32x16xf32> to vector<1x1x32x16xf32>
      tpu.vector_store %arg5[%c0_46, %c0_47, %c0_48, %c224], %96 {strides = array<i32>} : memref<1x1x32x256xf32, #tpu.memory_space<vmem>>, vector<1x1x32x16xf32>,
      %97 = vector.extract_strided_slice %6 {offsets = [0, 15], sizes = [32, 1], strides = [1, 1]} : vector<32x16xf32> to vector<32x1xf32>
      %98 = vector.shape_cast %97 : vector<32x1xf32> to vector<32x1xf32>
      %99 = vector.broadcast %98 : vector<32x1xf32> to vector<32x16xf32>
      %c0_49 = arith.constant 0 : index
      %c0_50 = arith.constant 0 : index
      %c0_51 = arith.constant 0 : index
      %c240 = arith.constant 240 : index
      %100 = vector.load %arg5[%c0_49, %c0_50, %c0_51, %c240] : memref<1x1x32x256xf32, #tpu.memory_space<vmem>>, vector<1x1x32x16xf32>
      %101 = vector.shape_cast %100 : vector<1x1x32x16xf32> to vector<32x16xf32>
      %102 = vector.shape_cast %99 : vector<32x16xf32> to vector<1x1x32x16xf32>
      tpu.vector_store %arg5[%c0_49, %c0_50, %c0_51, %c240], %102 {strides = array<i32>} : memref<1x1x32x256xf32, #tpu.memory_space<vmem>>, vector<1x1x32x16xf32>,
    } else {
    }
    return
  }
  func.func @transform_0(%arg0: i32, %arg1: i32, %arg2: i32) -> (i32, i32) {
    %c0_i32 = arith.constant 0 : i32
    %c0_i32_0 = arith.constant 0 : i32
    %c0_i32_1 = arith.constant 0 : i32
    return %c0_i32, %c0_i32_0 : i32, i32
  }
  func.func @transform_1(%arg0: i32, %arg1: i32, %arg2: i32) -> (i32, i32) {
    %c0_i32 = arith.constant 0 : i32
    %c0_i32_0 = arith.constant 0 : i32
    %c0_i32_1 = arith.constant 0 : i32
    return %c0_i32, %c0_i32_0 : i32, i32
  }
  func.func @transform_2(%arg0: i32, %arg1: i32, %arg2: i32) -> (i32, i32, i32, i32) {
    %c0_i32 = arith.constant 0 : i32
    %c0_i32_0 = arith.constant 0 : i32
    return %arg1, %arg0, %arg2, %c0_i32 : i32, i32, i32, i32
  }
}

</mosaic_0001>

<llo_original>
// kernel: tpu_custom_call.1
$region0: #{tpu_custom_call.1}
  #allocation0 [shape = 'u32[]', space=smem, size = 0x4, offset = 0x4, fixed_abs, tag = 'smem constant byte address 0x4 - core index']
  #allocation1 [shape = 'u32[72,128]{1,0:T(1,128)}', space=vmem, size = 0x9000, scoped, tag = 'internal scratch']
  %s0 = inlined_call_operand.vmem [shape: f32[32,16], index: 0, kind: input, shape index: {}]
  %s1 = inlined_call_operand.vmem [shape: f32[32,16], index: 1, kind: input, shape index: {}]
  %s2 = inlined_call_operand.hbm [shape: f32[2,2,32,256], index: 2, kind: output, shape index: {}]
  %s3 = sld [smem:[#allocation0]]
  $region49: #{tpu_custom_call.1} parent=0
    _
  %s5 = ssub.s32 1, %s3
  %s6 = scalar_select 0, %s5, %s3
  $region1: #{tpu_custom_call.1} parent=0
    #allocation2 [shape = 'u8[65536]{0}', space=vmem, size = 0x10000, scoped, tag = 'output window, operand 0']
    #allocation3 [shape = 's32[2]{0}', space=sflag, size = 0x8, scoped, tag = 'scoped memory for tpu_custom_call.1']
    %7 = vsyncpa [#allocation3], 0
    %s8 = scalar_lea.sflag [#allocation3], 1
    %9 = vsyncpa %s8, 0
    loop: start=0, step=1, limit=6
    $region2: #{tpu_custom_call.1} parent=1 // loop_pre_header
      _
    $region3: #{tpu_custom_call.1} parent=1 // loop_header
      %s11 = sphi 0, %s15
      %p12 = scmp.ge.s32.totalorder %s11, 6
      %s18 = sphi 0, %s37
      %s19 = sphi 0, %s33
      %s20 = sphi 0, %s29
      %s21 = sphi 0, %s18
      %s22 = sphi 0, %s19
      %s23 = sphi 0, %s20
      %s24 = sphi 0, %s21
      %s25 = sphi 0, %s22
      %s26 = sphi 0, %s23
      %s38 = sphi 0, %s38
      %s40 = sphi 0, %s38
      %s41 = sphi 0, %s40
      %s55 = sphi 0, %s41
      %s59 = sphi 0, %s59
      %s61 = sphi 0, %s59
      %s62 = sphi 0, %s61
      %s76 = sphi 0, %s62
      %s86 = sphi 0, %s88
      %s89 = sphi 0, %s86
      %s90 = sphi 0, %s89
      %s106 = sphi 0, %s90
    $region4: #{tpu_custom_call.1} parent=1 // loop_header_branch
      %14 = sbr.rel (%p12) target = $region8
    $region5: #{tpu_custom_call.1} parent=1 // loop_body
      %s16 = ssub.s32 %s11, 1
      %s17 = ssub.s32 %s11, 2
      %s27 = sadd.s32 1, %s20
      %p28 = scmp.ge.s32.totalorder %s27, 1
      %s29 = scalar_select %p28, 0, %s27
      %s30 = sadd.s32 1, %s19
      %s31 = scalar_select %p28, %s30, %s19
      %p32 = scmp.ge.s32.totalorder %s31, 2
      %s33 = scalar_select %p32, 0, %s31
      %s34 = sadd.s32 1, %s18
      %s35 = scalar_select %p32, %s34, %s18
      %p36 = scmp.ge.s32.totalorder %s35, 2
      %s37 = scalar_select %p36, 0, %s35
      %s39 = sadd.s32 %s38, 1
      %p42 = scmp.eq.s32.totalorder %s11, 3
      %p43 = scmp.ne.s32.totalorder %s38, %s40
      %p44 = scmp.eq.s32.totalorder %s11, 0
      %p45 = por %p43, %p44
      %p46 = scmp.ne.s32.totalorder %s38, %s40
      %p47 = scmp.eq.s32.totalorder %s16, 3
      %p48 = por %p46, %p47
      %p49 = scmp.ne.s32.totalorder %s40, %s41
      %p50 = scmp.eq.s32.totalorder %s16, 0
      %p51 = por %p49, %p50
      %p52 = scmp.ne.s32.totalorder %s40, %s41
      %p53 = scmp.eq.s32.totalorder %s17, 3
      %p54 = por %p52, %p53
      %p56 = scmp.ne.s32.totalorder %s41, %s55
      %p57 = scmp.eq.s32.totalorder %s17, 0
      %p58 = por %p56, %p57
      %s60 = sadd.s32 %s59, 1
      %p63 = scmp.eq.s32.totalorder %s11, 3
      %p64 = scmp.ne.s32.totalorder %s59, %s61
      %p65 = scmp.eq.s32.totalorder %s11, 0
      %p66 = por %p64, %p65
      %p67 = scmp.ne.s32.totalorder %s59, %s61
      %p68 = scmp.eq.s32.totalorder %s16, 3
      %p69 = por %p67, %p68
      %p70 = scmp.ne.s32.totalorder %s61, %s62
      %p71 = scmp.eq.s32.totalorder %s16, 0
      %p72 = por %p70, %p71
      %p73 = scmp.ne.s32.totalorder %s61, %s62
      %p74 = scmp.eq.s32.totalorder %s17, 3
      %p75 = por %p73, %p74
      %p77 = scmp.ne.s32.totalorder %s62, %s76
      %p78 = scmp.eq.s32.totalorder %s17, 0
      %p79 = por %p77, %p78
      %s80 = ssub.s32 %s19, %s33
      %s81 = ssub.s32 %s18, %s37
      %s82 = sor.u32 %s80, %s81
      %s83 = ssub.s32 %s20, %s29
      %s84 = sor.u32 %s82, %s83
      %p85 = scmp.eq.s32.totalorder %s84, 0
      %s87 = sadd.s32 %s86, 1
      %s88 = scalar_select %p85, %s86, %s87
      %p91 = pneg %p85
      %p92 = scmp.eq.s32.totalorder %s11, 3
      %p93 = por %p91, %p92
      %p94 = scmp.ne.s32.totalorder %s86, %s89
      %p95 = scmp.eq.s32.totalorder %s11, 0
      %p96 = por %p94, %p95
      %p97 = scmp.ne.s32.totalorder %s86, %s89
      %p98 = scmp.eq.s32.totalorder %s16, 3
      %p99 = por %p97, %p98
      %p100 = scmp.ne.s32.totalorder %s89, %s90
      %p101 = scmp.eq.s32.totalorder %s16, 0
      %p102 = por %p100, %p101
      %p103 = scmp.ne.s32.totalorder %s89, %s90
      %p104 = scmp.eq.s32.totalorder %s17, 3
      %p105 = por %p103, %p104
      %p107 = scmp.ne.s32.totalorder %s90, %s106
      %p108 = scmp.eq.s32.totalorder %s17, 0
      %p109 = por %p107, %p108
      %p110 = scmp.le.s32.totalorder 1, %s11
      %p111 = scmp.lt.s32.totalorder %s11, 5
      %p112 = pnand %p110, %p111
      %p113 = pneg %p112
      // Predicated region
      $region9: #{tpu_custom_call.1} parent=5 // pred_check
        _
      $region10: #{tpu_custom_call.1} parent=5 // pred_check_branch
        %115 = sbr.rel (%p112) target = $region12
      $region11: #{tpu_custom_call.1} parent=5 // pred_region
        %s116 = ssub.s32 %s11, 1
        // Predicated region
        $region13: #{tpu_custom_call.1} parent=11 // pred_check
          %p117 = pneg %p51
        $region14: #{tpu_custom_call.1} parent=11 // pred_check_branch
          %119 = sbr.rel (%p117) target = $region16
        $region15: #{tpu_custom_call.1} parent=11 // pred_region
          _
        $region16: #{tpu_custom_call.1} parent=11 // pred_fallthru
          _
        // Predicated region
        $region17: #{tpu_custom_call.1} parent=11 // pred_check
          %p120 = pneg %p72
        $region18: #{tpu_custom_call.1} parent=11 // pred_check_branch
          %122 = sbr.rel (%p120) target = $region20
        $region19: #{tpu_custom_call.1} parent=11 // pred_region
          _
        $region20: #{tpu_custom_call.1} parent=11 // pred_fallthru
          _
      $region12: #{tpu_custom_call.1} parent=5 // pred_fallthru
        _
      %p123 = scmp.lt.s32.totalorder %s11, 4
      // Predicated region
      $region21: #{tpu_custom_call.1} parent=5 // pred_check
        %p124 = pneg %p123
      $region22: #{tpu_custom_call.1} parent=5 // pred_check_branch
        %126 = sbr.rel (%p124) target = $region24
      $region23: #{tpu_custom_call.1} parent=5 // pred_region
        _
      $region24: #{tpu_custom_call.1} parent=5 // pred_fallthru
        _
      %p127 = scmp.le.s32.totalorder 1, %s11
      %p128 = scmp.lt.s32.totalorder %s11, 5
      %p129 = pnand %p127, %p128
      %p130 = pneg %p129
      // Predicated region
      $region25: #{tpu_custom_call.1} parent=5 // pred_check
        _
      $region26: #{tpu_custom_call.1} parent=5 // pred_check_branch
        %132 = sbr.rel (%p129) target = $region28
      $region27: #{tpu_custom_call.1} parent=5 // pred_region
        %s133 = ssub.s32 %s11, 1
        %p134 = pneg %p51
        %p135 = pneg %p48
        %p136 = pneg %p72
        %p137 = pneg %p69
        %p138 = pneg %p102
        %p139 = pneg %p99
        %s140 = sand.u32 %s89, 1
        %s141 = scalar_lea.sflag [#allocation3], %s140
        %s142 = sand.u32 %s89, 1
        %s143 = smul.addr %s142, 64
        %s144 = scalar_lea.vmem [#allocation2], %s143
        %s145 = smul.u32 4, %s23
        %p146 = scmp.eq.s32.totalorder %s21, 0
        // Predicated region
        $region29: #{tpu_custom_call.1} parent=27 // pred_check
          %p147 = pneg %p146
        $region30: #{tpu_custom_call.1} parent=27 // pred_check_branch
          %149 = sbr.rel (%p147) target = $region32
        $region31: #{tpu_custom_call.1} parent=27 // pred_region
          %v150 = vld [vmem:[%s0] sm:$0xff]
          %v151 = vld [vmem:[%s0 + $0x8] sm:$0xff]
          %v152 = vld [vmem:[%s0 + $0x10] sm:$0xff]
          %v153 = vld [vmem:[%s0 + $0x18] sm:$0xff]
          %158 = vrot.lane.b32.xlu0 %v150, 16
          %v159 = vpop.permute.xlu0 %158
          %160 = vrot.lane.b32.xlu0 %v151, 16
          %v161 = vpop.permute.xlu0 %160
          %162 = vrot.lane.b32.xlu0 %v152, 16
          %v163 = vpop.permute.xlu0 %162
          %164 = vrot.lane.b32.xlu0 %v153, 16
          %v165 = vpop.permute.xlu0 %164
          %170 = vrot.lane.b32.xlu0 %v150, 32
          %v171 = vpop.permute.xlu0 %170
          %172 = vrot.lane.b32.xlu0 %v151, 32
          %v173 = vpop.permute.xlu0 %172
          %174 = vrot.lane.b32.xlu0 %v152, 32
          %v175 = vpop.permute.xlu0 %174
          %176 = vrot.lane.b32.xlu0 %v153, 32
          %v177 = vpop.permute.xlu0 %176
          %182 = vrot.lane.b32.xlu0 %v150, 48
          %v183 = vpop.permute.xlu0 %182
          %184 = vrot.lane.b32.xlu0 %v151, 48
          %v185 = vpop.permute.xlu0 %184
          %186 = vrot.lane.b32.xlu0 %v152, 48
          %v187 = vpop.permute.xlu0 %186
          %188 = vrot.lane.b32.xlu0 %v153, 48
          %v189 = vpop.permute.xlu0 %188
          %194 = vrot.lane.b32.xlu0 %v150, 64
          %v195 = vpop.permute.xlu0 %194
          %196 = vrot.lane.b32.xlu0 %v151, 64
          %v197 = vpop.permute.xlu0 %196
          %198 = vrot.lane.b32.xlu0 %v152, 64
          %v199 = vpop.permute.xlu0 %198
          %200 = vrot.lane.b32.xlu0 %v153, 64
          %v201 = vpop.permute.xlu0 %200
          %206 = vrot.lane.b32.xlu0 %v150, 80
          %v207 = vpop.permute.xlu0 %206
          %208 = vrot.lane.b32.xlu0 %v151, 80
          %v209 = vpop.permute.xlu0 %208
          %210 = vrot.lane.b32.xlu0 %v152, 80
          %v211 = vpop.permute.xlu0 %210
          %212 = vrot.lane.b32.xlu0 %v153, 80
          %v213 = vpop.permute.xlu0 %212
          %218 = vrot.lane.b32.xlu0 %v150, 96
          %v219 = vpop.permute.xlu0 %218
          %220 = vrot.lane.b32.xlu0 %v151, 96
          %v221 = vpop.permute.xlu0 %220
          %222 = vrot.lane.b32.xlu0 %v152, 96
          %v223 = vpop.permute.xlu0 %222
          %224 = vrot.lane.b32.xlu0 %v153, 96
          %v225 = vpop.permute.xlu0 %224
          %230 = vrot.lane.b32.xlu0 %v150, 112
          %v231 = vpop.permute.xlu0 %230
          %232 = vrot.lane.b32.xlu0 %v151, 112
          %v233 = vpop.permute.xlu0 %232
          %234 = vrot.lane.b32.xlu0 %v152, 112
          %v235 = vpop.permute.xlu0 %234
          %236 = vrot.lane.b32.xlu0 %v153, 112
          %v237 = vpop.permute.xlu0 %236
          %vm242 = vcmask 130048
          %v243 = vsel %vm242, %v150, %v159
          %v244 = vsel %vm242, %v151, %v161
          %v245 = vsel %vm242, %v152, %v163
          %v246 = vsel %vm242, %v153, %v165
          %vm247 = vcmask 261120
          %v248 = vsel %vm247, %v243, %v171
          %v249 = vsel %vm247, %v244, %v173
          %v250 = vsel %vm247, %v245, %v175
          %v251 = vsel %vm247, %v246, %v177
          %vm252 = vcmask 392192
          %v253 = vsel %vm252, %v248, %v183
          %v254 = vsel %vm252, %v249, %v185
          %v255 = vsel %vm252, %v250, %v187
          %v256 = vsel %vm252, %v251, %v189
          %vm257 = vcmask 523264
          %v258 = vsel %vm257, %v253, %v195
          %v259 = vsel %vm257, %v254, %v197
          %v260 = vsel %vm257, %v255, %v199
          %v261 = vsel %vm257, %v256, %v201
          %vm262 = vcmask 654336
          %v263 = vsel %vm262, %v258, %v207
          %v264 = vsel %vm262, %v259, %v209
          %v265 = vsel %vm262, %v260, %v211
          %v266 = vsel %vm262, %v261, %v213
          %vm267 = vcmask 785408
          %v268 = vsel %vm267, %v263, %v219
          %v269 = vsel %vm267, %v264, %v221
          %v270 = vsel %vm267, %v265, %v223
          %v271 = vsel %vm267, %v266, %v225
          %vm272 = vcmask 916480
          %v273 = vsel %vm272, %v268, %v231
          %v274 = vsel %vm272, %v269, %v233
          %v275 = vsel %vm272, %v270, %v235
          %v276 = vsel %vm272, %v271, %v237
          %277 = vst [vmem:[%s144] sm:$0xff] %v273
          %278 = vst [vmem:[%s144 + $0x10] sm:$0xff] %v274
          %279 = vst [vmem:[%s144 + $0x20] sm:$0xff] %v275
          %280 = vst [vmem:[%s144 + $0x30] sm:$0xff] %v276
          %281 = vst [vmem:[%s144 + $0x8] sm:$0xff] %v273
          %282 = vst [vmem:[%s144 + $0x18] sm:$0xff] %v274
          %283 = vst [vmem:[%s144 + $0x28] sm:$0xff] %v275
          %284 = vst [vmem:[%s144 + $0x38] sm:$0xff] %v276
        $region32: #{tpu_custom_call.1} parent=27 // pred_fallthru
          _
        %p285 = scmp.eq.s32.totalorder %s21, 1
        // Predicated region
        $region33: #{tpu_custom_call.1} parent=27 // pred_check
          %p286 = pneg %p285
        $region34: #{tpu_custom_call.1} parent=27 // pred_check_branch
          %288 = sbr.rel (%p286) target = $region36
        $region35: #{tpu_custom_call.1} parent=27 // pred_region
          %v289 = vld [vmem:[%s1] sm:$0xff]
          %v290 = vld [vmem:[%s1 + $0x8] sm:$0xff]
          %v291 = vld [vmem:[%s1 + $0x10] sm:$0xff]
          %v292 = vld [vmem:[%s1 + $0x18] sm:$0xff]
          %294 = vset.pattern.permute.xlu0 0
          %295 = vperm.xlu0 %294, %v289
          %v296 = vpop.permute.xlu0 %295
          %299 = vset.pattern.permute.xlu0 0
          %300 = vperm.xlu0 %299, %v290
          %v301 = vpop.permute.xlu0 %300
          %304 = vset.pattern.permute.xlu0 0
          %305 = vperm.xlu0 %304, %v291
          %v306 = vpop.permute.xlu0 %305
          %309 = vset.pattern.permute.xlu0 0
          %310 = vperm.xlu0 %309, %v292
          %v311 = vpop.permute.xlu0 %310
          %vm313 = vcmask 130048
          %314 = vst.msk [vmem:[%s144] sm:$0xff] %vm313, %v296
          %315 = vst.msk [vmem:[%s144 + $0x10] sm:$0xff] %vm313, %v301
          %316 = vst.msk [vmem:[%s144 + $0x20] sm:$0xff] %vm313, %v306
          %317 = vst.msk [vmem:[%s144 + $0x30] sm:$0xff] %vm313, %v311
          %318 = vset.pattern.permute.xlu0 1
          %319 = vperm.xlu0 %318, %v289
          %v320 = vpop.permute.xlu0 %319
          %322 = vset.pattern.permute.xlu0 1
          %323 = vperm.xlu0 %322, %v290
          %v324 = vpop.permute.xlu0 %323
          %326 = vset.pattern.permute.xlu0 1
          %327 = vperm.xlu0 %326, %v291
          %v328 = vpop.permute.xlu0 %327
          %330 = vset.pattern.permute.xlu0 1
          %331 = vperm.xlu0 %330, %v292
          %v332 = vpop.permute.xlu0 %331
          %vm334 = vcmask 261248
          %335 = vst.msk [vmem:[%s144] sm:$0xff] %vm334, %v320
          %336 = vst.msk [vmem:[%s144 + $0x10] sm:$0xff] %vm334, %v324
          %337 = vst.msk [vmem:[%s144 + $0x20] sm:$0xff] %vm334, %v328
          %338 = vst.msk [vmem:[%s144 + $0x30] sm:$0xff] %vm334, %v332
          %339 = vset.pattern.permute.xlu0 2
          %340 = vperm.xlu0 %339, %v289
          %v341 = vpop.permute.xlu0 %340
          %343 = vset.pattern.permute.xlu0 2
          %344 = vperm.xlu0 %343, %v290
          %v345 = vpop.permute.xlu0 %344
          %347 = vset.pattern.permute.xlu0 2
          %348 = vperm.xlu0 %347, %v291
          %v349 = vpop.permute.xlu0 %348
          %351 = vset.pattern.permute.xlu0 2
          %352 = vperm.xlu0 %351, %v292
          %v353 = vpop.permute.xlu0 %352
          %vm355 = vcmask 392448
          %356 = vst.msk [vmem:[%s144] sm:$0xff] %vm355, %v341
          %357 = vst.msk [vmem:[%s144 + $0x10] sm:$0xff] %vm355, %v345
          %358 = vst.msk [vmem:[%s144 + $0x20] sm:$0xff] %vm355, %v349
          %359 = vst.msk [vmem:[%s144 + $0x30] sm:$0xff] %vm355, %v353
          %360 = vset.pattern.permute.xlu0 3
          %361 = vperm.xlu0 %360, %v289
          %v362 = vpop.permute.xlu0 %361
          %364 = vset.pattern.permute.xlu0 3
          %365 = vperm.xlu0 %364, %v290
          %v366 = vpop.permute.xlu0 %365
          %368 = vset.pattern.permute.xlu0 3
          %369 = vperm.xlu0 %368, %v291
          %v370 = vpop.permute.xlu0 %369
          %372 = vset.pattern.permute.xlu0 3
          %373 = vperm.xlu0 %372, %v292
          %v374 = vpop.permute.xlu0 %373
          %vm376 = vcmask 523648
          %377 = vst.msk [vmem:[%s144] sm:$0xff] %vm376, %v362
          %378 = vst.msk [vmem:[%s144 + $0x10] sm:$0xff] %vm376, %v366
          %379 = vst.msk [vmem:[%s144 + $0x20] sm:$0xff] %vm376, %v370
          %380 = vst.msk [vmem:[%s144 + $0x30] sm:$0xff] %vm376, %v374
          %381 = vset.pattern.permute.xlu0 4
          %382 = vperm.xlu0 %381, %v289
          %v383 = vpop.permute.xlu0 %382
          %385 = vset.pattern.permute.xlu0 4
          %386 = vperm.xlu0 %385, %v290
          %v387 = vpop.permute.xlu0 %386
          %389 = vset.pattern.permute.xlu0 4
          %390 = vperm.xlu0 %389, %v291
          %v391 = vpop.permute.xlu0 %390
          %393 = vset.pattern.permute.xlu0 4
          %394 = vperm.xlu0 %393, %v292
          %v395 = vpop.permute.xlu0 %394
          %vm397 = vcmask 654848
          %398 = vst.msk [vmem:[%s144] sm:$0xff] %vm397, %v383
          %399 = vst.msk [vmem:[%s144 + $0x10] sm:$0xff] %vm397, %v387
          %400 = vst.msk [vmem:[%s144 + $0x20] sm:$0xff] %vm397, %v391
          %401 = vst.msk [vmem:[%s144 + $0x30] sm:$0xff] %vm397, %v395
          %402 = vset.pattern.permute.xlu0 5
          %403 = vperm.xlu0 %402, %v289
          %v404 = vpop.permute.xlu0 %403
          %406 = vset.pattern.permute.xlu0 5
          %407 = vperm.xlu0 %406, %v290
          %v408 = vpop.permute.xlu0 %407
          %410 = vset.pattern.permute.xlu0 5
          %411 = vperm.xlu0 %410, %v291
          %v412 = vpop.permute.xlu0 %411
          %414 = vset.pattern.permute.xlu0 5
          %415 = vperm.xlu0 %414, %v292
          %v416 = vpop.permute.xlu0 %415
          %vm418 = vcmask 786048
          %419 = vst.msk [vmem:[%s144] sm:$0xff] %vm418, %v404
          %420 = vst.msk [vmem:[%s144 + $0x10] sm:$0xff] %vm418, %v408
          %421 = vst.msk [vmem:[%s144 + $0x20] sm:$0xff] %vm418, %v412
          %422 = vst.msk [vmem:[%s144 + $0x30] sm:$0xff] %vm418, %v416
          %423 = vset.pattern.permute.xlu0 6
          %424 = vperm.xlu0 %423, %v289
          %v425 = vpop.permute.xlu0 %424
          %427 = vset.pattern.permute.xlu0 6
          %428 = vperm.xlu0 %427, %v290
          %v429 = vpop.permute.xlu0 %428
          %431 = vset.pattern.permute.xlu0 6
          %432 = vperm.xlu0 %431, %v291
          %v433 = vpop.permute.xlu0 %432
          %435 = vset.pattern.permute.xlu0 6
          %436 = vperm.xlu0 %435, %v292
          %v437 = vpop.permute.xlu0 %436
          %vm439 = vcmask 917248
          %440 = vst.msk [vmem:[%s144] sm:$0xff] %vm439, %v425
          %441 = vst.msk [vmem:[%s144 + $0x10] sm:$0xff] %vm439, %v429
          %442 = vst.msk [vmem:[%s144 + $0x20] sm:$0xff] %vm439, %v433
          %443 = vst.msk [vmem:[%s144 + $0x30] sm:$0xff] %vm439, %v437
          %444 = vset.pattern.permute.xlu0 7
          %445 = vperm.xlu0 %444, %v289
          %v446 = vpop.permute.xlu0 %445
          %448 = vset.pattern.permute.xlu0 7
          %449 = vperm.xlu0 %448, %v290
          %v450 = vpop.permute.xlu0 %449
          %452 = vset.pattern.permute.xlu0 7
          %453 = vperm.xlu0 %452, %v291
          %v454 = vpop.permute.xlu0 %453
          %456 = vset.pattern.permute.xlu0 7
          %457 = vperm.xlu0 %456, %v292
          %v458 = vpop.permute.xlu0 %457
          %vm460 = vcmask 1048448
          %461 = vst.msk [vmem:[%s144] sm:$0xff] %vm460, %v446
          %462 = vst.msk [vmem:[%s144 + $0x10] sm:$0xff] %vm460, %v450
          %463 = vst.msk [vmem:[%s144 + $0x20] sm:$0xff] %vm460, %v454
          %464 = vst.msk [vmem:[%s144 + $0x30] sm:$0xff] %vm460, %v458
          %465 = vset.pattern.permute.xlu0 8
          %466 = vperm.xlu0 %465, %v289
          %v467 = vpop.permute.xlu0 %466
          %469 = vset.pattern.permute.xlu0 8
          %470 = vperm.xlu0 %469, %v290
          %v471 = vpop.permute.xlu0 %470
          %473 = vset.pattern.permute.xlu0 8
          %474 = vperm.xlu0 %473, %v291
          %v475 = vpop.permute.xlu0 %474
          %477 = vset.pattern.permute.xlu0 8
          %478 = vperm.xlu0 %477, %v292
          %v479 = vpop.permute.xlu0 %478
          %481 = vst.msk [vmem:[%s144 + $0x8] sm:$0xff] %vm313, %v467
          %482 = vst.msk [vmem:[%s144 + $0x18] sm:$0xff] %vm313, %v471
          %483 = vst.msk [vmem:[%s144 + $0x28] sm:$0xff] %vm313, %v475
          %484 = vst.msk [vmem:[%s144 + $0x38] sm:$0xff] %vm313, %v479
          %485 = vset.pattern.permute.xlu0 9
          %486 = vperm.xlu0 %485, %v289
          %v487 = vpop.permute.xlu0 %486
          %489 = vset.pattern.permute.xlu0 9
          %490 = vperm.xlu0 %489, %v290
          %v491 = vpop.permute.xlu0 %490
          %493 = vset.pattern.permute.xlu0 9
          %494 = vperm.xlu0 %493, %v291
          %v495 = vpop.permute.xlu0 %494
          %497 = vset.pattern.permute.xlu0 9
          %498 = vperm.xlu0 %497, %v292
          %v499 = vpop.permute.xlu0 %498
          %501 = vst.msk [vmem:[%s144 + $0x8] sm:$0xff] %vm334, %v487
          %502 = vst.msk [vmem:[%s144 + $0x18] sm:$0xff] %vm334, %v491
          %503 = vst.msk [vmem:[%s144 + $0x28] sm:$0xff] %vm334, %v495
          %504 = vst.msk [vmem:[%s144 + $0x38] sm:$0xff] %vm334, %v499
          %505 = vset.pattern.permute.xlu0 10
          %506 = vperm.xlu0 %505, %v289
          %v507 = vpop.permute.xlu0 %506
          %509 = vset.pattern.permute.xlu0 10
          %510 = vperm.xlu0 %509, %v290
          %v511 = vpop.permute.xlu0 %510
          %513 = vset.pattern.permute.xlu0 10
          %514 = vperm.xlu0 %513, %v291
          %v515 = vpop.permute.xlu0 %514
          %517 = vset.pattern.permute.xlu0 10
          %518 = vperm.xlu0 %517, %v292
          %v519 = vpop.permute.xlu0 %518
          %521 = vst.msk [vmem:[%s144 + $0x8] sm:$0xff] %vm355, %v507
          %522 = vst.msk [vmem:[%s144 + $0x18] sm:$0xff] %vm355, %v511
          %523 = vst.msk [vmem:[%s144 + $0x28] sm:$0xff] %vm355, %v515
          %524 = vst.msk [vmem:[%s144 + $0x38] sm:$0xff] %vm355, %v519
          %525 = vset.pattern.permute.xlu0 11
          %526 = vperm.xlu0 %525, %v289
          %v527 = vpop.permute.xlu0 %526
          %529 = vset.pattern.permute.xlu0 11
          %530 = vperm.xlu0 %529, %v290
          %v531 = vpop.permute.xlu0 %530
          %533 = vset.pattern.permute.xlu0 11
          %534 = vperm.xlu0 %533, %v291
          %v535 = vpop.permute.xlu0 %534
          %537 = vset.pattern.permute.xlu0 11
          %538 = vperm.xlu0 %537, %v292
          %v539 = vpop.permute.xlu0 %538
          %541 = vst.msk [vmem:[%s144 + $0x8] sm:$0xff] %vm376, %v527
          %542 = vst.msk [vmem:[%s144 + $0x18] sm:$0xff] %vm376, %v531
          %543 = vst.msk [vmem:[%s144 + $0x28] sm:$0xff] %vm376, %v535
          %544 = vst.msk [vmem:[%s144 + $0x38] sm:$0xff] %vm376, %v539
          %545 = vset.pattern.permute.xlu0 12
          %546 = vperm.xlu0 %545, %v289
          %v547 = vpop.permute.xlu0 %546
          %549 = vset.pattern.permute.xlu0 12
          %550 = vperm.xlu0 %549, %v290
          %v551 = vpop.permute.xlu0 %550
          %553 = vset.pattern.permute.xlu0 12
          %554 = vperm.xlu0 %553, %v291
          %v555 = vpop.permute.xlu0 %554
          %557 = vset.pattern.permute.xlu0 12
          %558 = vperm.xlu0 %557, %v292
          %v559 = vpop.permute.xlu0 %558
          %561 = vst.msk [vmem:[%s144 + $0x8] sm:$0xff] %vm397, %v547
          %562 = vst.msk [vmem:[%s144 + $0x18] sm:$0xff] %vm397, %v551
          %563 = vst.msk [vmem:[%s144 + $0x28] sm:$0xff] %vm397, %v555
          %564 = vst.msk [vmem:[%s144 + $0x38] sm:$0xff] %vm397, %v559
          %565 = vset.pattern.permute.xlu0 13
          %566 = vperm.xlu0 %565, %v289
          %v567 = vpop.permute.xlu0 %566
          %569 = vset.pattern.permute.xlu0 13
          %570 = vperm.xlu0 %569, %v290
          %v571 = vpop.permute.xlu0 %570
          %573 = vset.pattern.permute.xlu0 13
          %574 = vperm.xlu0 %573, %v291
          %v575 = vpop.permute.xlu0 %574
          %577 = vset.pattern.permute.xlu0 13
          %578 = vperm.xlu0 %577, %v292
          %v579 = vpop.permute.xlu0 %578
          %581 = vst.msk [vmem:[%s144 + $0x8] sm:$0xff] %vm418, %v567
          %582 = vst.msk [vmem:[%s144 + $0x18] sm:$0xff] %vm418, %v571
          %583 = vst.msk [vmem:[%s144 + $0x28] sm:$0xff] %vm418, %v575
          %584 = vst.msk [vmem:[%s144 + $0x38] sm:$0xff] %vm418, %v579
          %585 = vset.pattern.permute.xlu0 14
          %586 = vperm.xlu0 %585, %v289
          %v587 = vpop.permute.xlu0 %586
          %589 = vset.pattern.permute.xlu0 14
          %590 = vperm.xlu0 %589, %v290
          %v591 = vpop.permute.xlu0 %590
          %593 = vset.pattern.permute.xlu0 14
          %594 = vperm.xlu0 %593, %v291
          %v595 = vpop.permute.xlu0 %594
          %597 = vset.pattern.permute.xlu0 14
          %598 = vperm.xlu0 %597, %v292
          %v599 = vpop.permute.xlu0 %598
          %601 = vst.msk [vmem:[%s144 + $0x8] sm:$0xff] %vm439, %v587
          %602 = vst.msk [vmem:[%s144 + $0x18] sm:$0xff] %vm439, %v591
          %603 = vst.msk [vmem:[%s144 + $0x28] sm:$0xff] %vm439, %v595
          %604 = vst.msk [vmem:[%s144 + $0x38] sm:$0xff] %vm439, %v599
          %605 = vset.pattern.permute.xlu0 15
          %606 = vperm.xlu0 %605, %v289
          %v607 = vpop.permute.xlu0 %606
          %609 = vset.pattern.permute.xlu0 15
          %610 = vperm.xlu0 %609, %v290
          %v611 = vpop.permute.xlu0 %610
          %613 = vset.pattern.permute.xlu0 15
          %614 = vperm.xlu0 %613, %v291
          %v615 = vpop.permute.xlu0 %614
          %617 = vset.pattern.permute.xlu0 15
          %618 = vperm.xlu0 %617, %v292
          %v619 = vpop.permute.xlu0 %618
          %621 = vst.msk [vmem:[%s144 + $0x8] sm:$0xff] %vm460, %v607
          %622 = vst.msk [vmem:[%s144 + $0x18] sm:$0xff] %vm460, %v611
          %623 = vst.msk [vmem:[%s144 + $0x28] sm:$0xff] %vm460, %v615
          %624 = vst.msk [vmem:[%s144 + $0x38] sm:$0xff] %vm460, %v619
        $region36: #{tpu_custom_call.1} parent=27 // pred_fallthru
          _
        %s625 = sand.u32 %s89, 1
        %s626 = scalar_lea.sflag [#allocation3], %s625
        %s627 = sand.u32 %s89, 1
        %s628 = smul.addr %s627, 64
        %s629 = scalar_lea.vmem [#allocation2], %s628
        // Predicated region
        $region37: #{tpu_custom_call.1} parent=27 // pred_check
          %p630 = pneg %p99
        $region38: #{tpu_custom_call.1} parent=27 // pred_check_branch
          %632 = sbr.rel (%p630) target = $region40
        $region39: #{tpu_custom_call.1} parent=27 // pred_region
          %s633 = smul.u32 4, %s23
          %635 = vsyncadd %s626, 0
          %s636 = smul.addr %s633, 2
          %s637 = smul.addr %s21, 8
          %s638 = sadd.s32 %s636, %s637
          %s639 = smul.addr %s22, 16
          %s640 = sadd.s32 %s638, %s639
          %s641 = smul.addr %s640, 8
          %s642 = scalar_lea.hbm %s2, %s641
          %s643 = sshll.u32 %s629, 4
          %s644 = int_to_ptr.vmem [resolvable:$true] %s643
          %s645 = sshll.u32 %s642, 4
          %s646 = int_to_ptr.hbm [resolvable:$true] %s645
          %651 = dma.vmem_to_hbm [thread:$0]  %s644, 1024, %s646, %s626, 256, 256, 16
        $region40: #{tpu_custom_call.1} parent=27 // pred_fallthru
          _
      $region28: #{tpu_custom_call.1} parent=5 // pred_fallthru
        _
      %p652 = scmp.le.s32.totalorder 2, %s11
      // Predicated region
      $region41: #{tpu_custom_call.1} parent=5 // pred_check
        %p653 = pneg %p652
      $region42: #{tpu_custom_call.1} parent=5 // pred_check_branch
        %655 = sbr.rel (%p653) target = $region44
      $region43: #{tpu_custom_call.1} parent=5 // pred_region
        %s656 = ssub.s32 %s11, 2
        // Predicated region
        $region45: #{tpu_custom_call.1} parent=43 // pred_check
          %p657 = pneg %p105
        $region46: #{tpu_custom_call.1} parent=43 // pred_check_branch
          %659 = sbr.rel (%p657) target = $region48
        $region47: #{tpu_custom_call.1} parent=43 // pred_region
          %s660 = sand.u32 %s90, 1
          %s661 = scalar_lea.sflag [#allocation3], %s660
          %s662 = sand.u32 %s90, 1
          %s663 = smul.addr %s662, 64
          %s664 = scalar_lea.vmem [#allocation2], %s663
          %666 = dma.done %s661, 1024
        $region48: #{tpu_custom_call.1} parent=43 // pred_fallthru
          _
      $region44: #{tpu_custom_call.1} parent=5 // pred_fallthru
        _
    $region6: #{tpu_custom_call.1} parent=1 // loop_footer
      %s15 = sadd.s32 1, %s11
    $region7: #{tpu_custom_call.1} parent=1 // loop_footer_branch
      %10 = sbr.rel target = $region3
    $region8: #{tpu_custom_call.1} parent=1 // loop_exit
      _
    %667 = vsyncpa [#allocation3], 1
    %s668 = scalar_lea.sflag [#allocation3], 1
    %669 = vsyncpa %s668, 1

</llo_original>
